<compile_context>
chip_gen: v5e
topology: v5e:2x2
jax: 0.10.0
libtpu: 0.0.40
codegen_flags: <defaults>
</compile_context>

<pallas_src>
import functools

import jax
import jax.numpy as jnp
from jax.experimental import pallas as pl
from jax.experimental.pallas import tpu as pltpu


def _conv1_im2col_indices():
    """Static scatter indices for the (288, 64) conv1 im2col weight matrix.

    Row order is quadrant-major: row = (a*2+b)*72 + c*9 + pi*3 + pj, where
    (a, b) is the position inside the 2x2 maxpool window, c is the conv1
    output channel, and (pi, pj) is the pooled spatial position.  Column is
    the flattened 8x8 input position (oi+di)*8 + (oj+dj) with
    (oi, oj) = (2*pi + a, 2*pj + b).
    """
    rows, cols, chans, taps = [], [], [], []
    for a in range(2):
        for b in range(2):
            q = a * 2 + b
            for c in range(8):
                for pi in range(3):
                    for pj in range(3):
                        r = q * 72 + c * 9 + pi * 3 + pj
                        oi, oj = 2 * pi + a, 2 * pj + b
                        for di in range(3):
                            for dj in range(3):
                                rows.append(r)
                                cols.append((oi + di) * 8 + (oj + dj))
                                chans.append(c)
                                taps.append(di * 3 + dj)
    return tuple(rows), tuple(cols), tuple(chans), tuple(taps)


_A_ROWS, _A_COLS, _A_CHANS, _A_TAPS = _conv1_im2col_indices()


def digits_convnet_kernel(x_ref, a_ref, b1_ref, w2_ref, b2_ref,
                          wfc_ref, bfc_ref, out_ref):
    # x_ref: (TN, 64) batch-major rows.  Transpose on the (otherwise idle)
    # XLU so batch sits on the 128-lane axis for everything downstream.
    xcols = jnp.transpose(x_ref[...].astype(jnp.float32))            # (64, TN)

    # conv1 (1->8, k=3), for all 4 positions of each 2x2 pool window, as ONE
    # MXU matmul against the precomputed im2col weight matrix A (288, 64).
    y1 = jnp.dot(a_ref[...], xcols,
                 preferred_element_type=jnp.float32)                 # (288, TN)

    # 2x2 maxpool == max over the 4 quadrant slabs (3 whole-vreg maxes; each
    # slab starts at a sublane offset that is a multiple of 8).  Bias + ReLU
    # commute with the max because the bias is constant per channel.
    pooled = jnp.maximum(jnp.maximum(y1[0:72], y1[72:144]),
                         jnp.maximum(y1[144:216], y1[216:288]))      # (72, TN)
    act1 = jnp.maximum(pooled + b1_ref[...], 0.0)                    # (72, TN)

    # conv2 (8->4 over the pooled 3x3 map) == (4,72)x(72,TN) matmul + ReLU.
    y2 = jnp.dot(w2_ref[...], act1, preferred_element_type=jnp.float32)
    y2 = jnp.maximum(y2 + b2_ref[...], 0.0)                          # (4, TN)

    # fc (4 -> 10); output stays lane-dense (10, TN) -> unmasked full stores.
    out = jnp.dot(wfc_ref[...], y2,
                  preferred_element_type=jnp.float32) + bfc_ref[...]
    out_ref[...] = out.astype(out_ref.dtype)


@functools.partial(jax.jit, static_argnames=("tn",))
def digits_convnet(x, W1, b1, W2, b2, Wfc, bfc, *, tn=1024):
    """Forward pass. x: (N, 8, 8); params in PyTorch-native layouts.

    tn must be a multiple of 128.  Keep tn <= ~4096 on v7x (64 MiB VMEM).
    x may be fed as bfloat16 (the kernel upcasts) to halve HBM input traffic.
    """
    n = x.shape[0]

    # No host-side transpose: flatten to (N, 64); the lane-layout fix is done
    # in-kernel on the XLU.
    x_flat = x.reshape(n, 64)

    # Build the (288, 64) im2col conv1 weight matrix (quadrant-major rows).
    w1_flat = W1.reshape(8, 9).astype(jnp.float32)
    vals = w1_flat[jnp.asarray(_A_CHANS), jnp.asarray(_A_TAPS)]
    A = jnp.zeros((288, 64), jnp.float32).at[
        jnp.asarray(_A_ROWS), jnp.asarray(_A_COLS)].set(vals)

    # Per-row conv1 bias for the pooled (72, TN) activations: row k -> b1[k//9].
    b1_rows = jnp.repeat(b1.astype(jnp.float32), 9).reshape(72, 1)
    w2 = W2.reshape(4, 72).astype(jnp.float32)     # [out_c, in_c*9 + ki*3 + kj]
    b2c = b2.reshape(4, 1).astype(jnp.float32)
    wfc = Wfc.astype(jnp.float32)                  # (10, 4)
    bfcc = bfc.reshape(10, 1).astype(jnp.float32)

    grid = (pl.cdiv(n, tn),)
    flops = (288 * 64 * 2 + 4 * 72 * 2 + 10 * 4 * 2) * n
    bytes_accessed = (64 + 10) * 4 * n + (288 * 64 + 72 + 288 + 4 + 40 + 10) * 4

    out = pl.pallas_call(
        digits_convnet_kernel,
        out_shape=jax.ShapeDtypeStruct((10, n), jnp.float32),
        grid=grid,
        in_specs=[
            pl.BlockSpec((tn, 64), lambda i: (i, 0)),        # x      (N, 64)
            pl.BlockSpec((288, 64), lambda i: (0, 0)),       # A      im2col conv1
            pl.BlockSpec((72, 1), lambda i: (0, 0)),         # b1 per pooled row
            pl.BlockSpec((4, 72), lambda i: (0, 0)),         # w2
            pl.BlockSpec((4, 1), lambda i: (0, 0)),          # b2
            pl.BlockSpec((10, 4), lambda i: (0, 0)),         # wfc
            pl.BlockSpec((10, 1), lambda i: (0, 0)),         # bfc
        ],
        out_specs=pl.BlockSpec((10, tn), lambda i: (0, i)),
        compiler_params=pltpu.CompilerParams(
            dimension_semantics=("parallel",),
            vmem_limit_bytes=32 * 1024 * 1024),
        cost_estimate=pl.CostEstimate(flops=flops, transcendentals=0,
                                      bytes_accessed=bytes_accessed),
    )(x_flat, A, b1_rows, w2, b2c, wfc, bfcc)

    return out.T                                             # (N, 10)


def init_params(key):
    """Deterministic synthetic params in PyTorch-native layouts."""
    k1, k2, k3, k4, k5, k6 = jax.random.split(key, 6)
    W1 = jax.random.normal(k1, (8, 1, 3, 3), jnp.float32) * 0.2   # conv1.weight
    b1 = jax.random.normal(k2, (8,), jnp.float32) * 0.1           # conv1.bias
    W2 = jax.random.normal(k3, (4, 8, 3, 3), jnp.float32) * 0.2   # conv2.weight
    b2 = jax.random.normal(k4, (4,), jnp.float32) * 0.1           # conv2.bias
    Wfc = jax.random.normal(k5, (10, 4), jnp.float32) * 0.3       # fc.weight
    bfc = jax.random.normal(k6, (10,), jnp.float32) * 0.1         # fc.bias
    return W1, b1, W2, b2, Wfc, bfc


def ref_forward(x, W1, b1, W2, b2, Wfc, bfc):
    """Pure-JAX (XLA) reference matching the PyTorch forward pass exactly."""
    xb = x.reshape(-1, 1, 8, 8)
    dn = ("NCHW", "OIHW", "NCHW")
    y = jax.lax.conv_general_dilated(xb, W1, (1, 1), "VALID",
                                     dimension_numbers=dn)
    y = jnp.maximum(y + b1[None, :, None, None], 0.0)
    y = jax.lax.reduce_window(y, -jnp.inf, jax.lax.max,
                              (1, 1, 2, 2), (1, 1, 2, 2), "VALID")
    y = jax.lax.conv_general_dilated(y, W2, (1, 1), "VALID",
                                     dimension_numbers=dn)
    y = jnp.maximum(y + b2[None, :, None, None], 0.0)
    y = y.reshape(-1, 4)
    return y @ Wfc.T + bfc[None, :]


if __name__ == "__main__":
    key = jax.random.PRNGKey(0)
    kx, kp = jax.random.split(key)

    # Small correctness run; tn=256 gives an 8-step grid (>=4 steps per
    # TensorCore on v7x so megacore + DMA/compute pipelining are exercised).
    # For throughput benchmarking use larger N with the default tn=1024.
    N = 2048
    x = jax.random.normal(kx, (N, 8, 8), jnp.float32)

    W1, b1, W2, b2, Wfc, bfc = init_params(kp)

    out = digits_convnet(x, W1, b1, W2, b2, Wfc, bfc, tn=256)
    out = jax.block_until_ready(out)

    ref = ref_forward(x, W1, b1, W2, b2, Wfc, bfc)
    assert out.shape == (N, 10)
    assert jnp.allclose(out, ref, atol=2e-3, rtol=2e-3), (
        f"max abs err = {jnp.max(jnp.abs(out - ref))}")

    print("KERNEL_OK")
</pallas_src>

<mosaic_0001>
module attributes {stable_mosaic.version = 11 : i64} {
  func.func @digits_convnet_kernel(%arg0: i32, %arg1: memref<256x64xf32, #tpu.memory_space<vmem>>, %arg2: memref<288x64xf32, #tpu.memory_space<vmem>>, %arg3: memref<72x1xf32, #tpu.memory_space<vmem>>, %arg4: memref<4x72xf32, #tpu.memory_space<vmem>>, %arg5: memref<4x1xf32, #tpu.memory_space<vmem>>, %arg6: memref<10x4xf32, #tpu.memory_space<vmem>>, %arg7: memref<10x1xf32, #tpu.memory_space<vmem>>, %arg8: memref<10x256xf32, #tpu.memory_space<vmem>>) attributes {dimension_semantics = [#tpu.dimension_semantics<parallel>], iteration_bounds = array<i64: 8>, scalar_prefetch = 0 : i64, scratch_operands = 0 : i64, tpu.core_type = #tpu.core_type<tc>, window_params = [{transform_indices = @transform_0, window_bounds = array<i64: 256, 64>}, {pipeline_mode = #tpu.pipeline_mode<synchronous>, transform_indices = @transform_1, window_bounds = array<i64: 288, 64>}, {pipeline_mode = #tpu.pipeline_mode<synchronous>, transform_indices = @transform_2, window_bounds = array<i64: 72, 1>}, {pipeline_mode = #tpu.pipeline_mode<synchronous>, transform_indices = @transform_3, window_bounds = array<i64: 4, 72>}, {pipeline_mode = #tpu.pipeline_mode<synchronous>, transform_indices = @transform_4, window_bounds = array<i64: 4, 1>}, {pipeline_mode = #tpu.pipeline_mode<synchronous>, transform_indices = @transform_5, window_bounds = array<i64: 10, 4>}, {pipeline_mode = #tpu.pipeline_mode<synchronous>, transform_indices = @transform_6, window_bounds = array<i64: 10, 1>}, {transform_indices = @transform_7, window_bounds = array<i64: 10, 256>}]} {
    %c0 = arith.constant 0 : index
    %c0_0 = arith.constant 0 : index
    %0 = vector.load %arg1[%c0, %c0_0] : memref<256x64xf32, #tpu.memory_space<vmem>>, vector<256x64xf32>
    %1 = tpu.transpose %0, [1, 0] : vector<256x64xf32> -> vector<64x256xf32>
    %c0_1 = arith.constant 0 : index
    %c0_2 = arith.constant 0 : index
    %2 = vector.load %arg2[%c0_1, %c0_2] : memref<288x64xf32, #tpu.memory_space<vmem>>, vector<288x64xf32>
    %cst = arith.constant dense<0.000000e+00> : vector<288x256xf32>
    %3 = tpu.matmul %2, %1, %cst {dimension_numbers = #tpu.dot_dimension_numbers<[1], [0], [0], [1], [0, 0, 1, 1], [], []>} : vector<288x64xf32>, vector<64x256xf32>, vector<288x256xf32> -> vector<288x256xf32>
    %4 = vector.extract_strided_slice %3 {offsets = [0, 0], sizes = [72, 256], strides = [1, 1]} : vector<288x256xf32> to vector<72x256xf32>
    %5 = vector.extract_strided_slice %3 {offsets = [72, 0], sizes = [72, 256], strides = [1, 1]} : vector<288x256xf32> to vector<72x256xf32>
    %6 = arith.maximumf %4, %5 : vector<72x256xf32>
    %7 = vector.extract_strided_slice %3 {offsets = [144, 0], sizes = [72, 256], strides = [1, 1]} : vector<288x256xf32> to vector<72x256xf32>
    %8 = vector.extract_strided_slice %3 {offsets = [216, 0], sizes = [72, 256], strides = [1, 1]} : vector<288x256xf32> to vector<72x256xf32>
    %9 = arith.maximumf %7, %8 : vector<72x256xf32>
    %10 = arith.maximumf %6, %9 : vector<72x256xf32>
    %c0_3 = arith.constant 0 : index
    %c0_4 = arith.constant 0 : index
    %11 = vector.load %arg3[%c0_3, %c0_4] : memref<72x1xf32, #tpu.memory_space<vmem>>, vector<72x1xf32>
    %12 = vector.broadcast %11 : vector<72x1xf32> to vector<72x256xf32>
    %13 = arith.addf %10, %12 : vector<72x256xf32>
    %cst_5 = arith.constant 0.000000e+00 : f32
    %14 = vector.broadcast %cst_5 : f32 to vector<72x256xf32>
    %15 = arith.maximumf %13, %14 : vector<72x256xf32>
    %c0_6 = arith.constant 0 : index
    %c0_7 = arith.constant 0 : index
    %16 = vector.load %arg4[%c0_6, %c0_7] : memref<4x72xf32, #tpu.memory_space<vmem>>, vector<4x72xf32>
    %cst_8 = arith.constant dense<0.000000e+00> : vector<4x256xf32>
    %17 = tpu.matmul %16, %15, %cst_8 {dimension_numbers = #tpu.dot_dimension_numbers<[1], [0], [0], [1], [0, 0, 1, 1], [], []>} : vector<4x72xf32>, vector<72x256xf32>, vector<4x256xf32> -> vector<4x256xf32>
    %c0_9 = arith.constant 0 : index
    %c0_10 = arith.constant 0 : index
    %18 = vector.load %arg5[%c0_9, %c0_10] : memref<4x1xf32, #tpu.memory_space<vmem>>, vector<4x1xf32>
    %19 = vector.broadcast %18 : vector<4x1xf32> to vector<4x256xf32>
    %20 = arith.addf %17, %19 : vector<4x256xf32>
    %cst_11 = arith.constant 0.000000e+00 : f32
    %21 = vector.broadcast %cst_11 : f32 to vector<4x256xf32>
    %22 = arith.maximumf %20, %21 : vector<4x256xf32>
    %c0_12 = arith.constant 0 : index
    %c0_13 = arith.constant 0 : index
    %23 = vector.load %arg6[%c0_12, %c0_13] : memref<10x4xf32, #tpu.memory_space<vmem>>, vector<10x4xf32>
    %cst_14 = arith.constant dense<0.000000e+00> : vector<10x256xf32>
    %24 = tpu.matmul %23, %22, %cst_14 {dimension_numbers = #tpu.dot_dimension_numbers<[1], [0], [0], [1], [0, 0, 1, 1], [], []>} : vector<10x4xf32>, vector<4x256xf32>, vector<10x256xf32> -> vector<10x256xf32>
    %c0_15 = arith.constant 0 : index
    %c0_16 = arith.constant 0 : index
    %25 = vector.load %arg7[%c0_15, %c0_16] : memref<10x1xf32, #tpu.memory_space<vmem>>, vector<10x1xf32>
    %26 = vector.broadcast %25 : vector<10x1xf32> to vector<10x256xf32>
    %27 = arith.addf %24, %26 : vector<10x256xf32>
    %c0_17 = arith.constant 0 : index
    %c0_18 = arith.constant 0 : index
    %28 = vector.load %arg8[%c0_17, %c0_18] : memref<10x256xf32, #tpu.memory_space<vmem>>, vector<10x256xf32>
    tpu.vector_store %arg8[%c0_17, %c0_18], %27 {strides = array<i32>} : memref<10x256xf32, #tpu.memory_space<vmem>>, vector<10x256xf32>,
    return
  }
  func.func @transform_0(%arg0: i32) -> (i32, i32) {
    %c0_i32 = arith.constant 0 : i32
    %c0_i32_0 = arith.constant 0 : i32
    return %arg0, %c0_i32 : i32, i32
  }
  func.func @transform_1(%arg0: i32) -> (i32, i32) {
    %c0_i32 = arith.constant 0 : i32
    %c0_i32_0 = arith.constant 0 : i32
    %c0_i32_1 = arith.constant 0 : i32
    return %c0_i32, %c0_i32_0 : i32, i32
  }
  func.func @transform_2(%arg0: i32) -> (i32, i32) {
    %c0_i32 = arith.constant 0 : i32
    %c0_i32_0 = arith.constant 0 : i32
    %c0_i32_1 = arith.constant 0 : i32
    return %c0_i32, %c0_i32_0 : i32, i32
  }
  func.func @transform_3(%arg0: i32) -> (i32, i32) {
    %c0_i32 = arith.constant 0 : i32
    %c0_i32_0 = arith.constant 0 : i32
    %c0_i32_1 = arith.constant 0 : i32
    return %c0_i32, %c0_i32_0 : i32, i32
  }
  func.func @transform_4(%arg0: i32) -> (i32, i32) {
    %c0_i32 = arith.constant 0 : i32
    %c0_i32_0 = arith.constant 0 : i32
    %c0_i32_1 = arith.constant 0 : i32
    return %c0_i32, %c0_i32_0 : i32, i32
  }
  func.func @transform_5(%arg0: i32) -> (i32, i32) {
    %c0_i32 = arith.constant 0 : i32
    %c0_i32_0 = arith.constant 0 : i32
    %c0_i32_1 = arith.constant 0 : i32
    return %c0_i32, %c0_i32_0 : i32, i32
  }
  func.func @transform_6(%arg0: i32) -> (i32, i32) {
    %c0_i32 = arith.constant 0 : i32
    %c0_i32_0 = arith.constant 0 : i32
    %c0_i32_1 = arith.constant 0 : i32
    return %c0_i32, %c0_i32_0 : i32, i32
  }
  func.func @transform_7(%arg0: i32) -> (i32, i32) {
    %c0_i32 = arith.constant 0 : i32
    %c0_i32_0 = arith.constant 0 : i32
    return %c0_i32, %arg0 : i32, i32
  }
}

</mosaic_0001>

<llo_original>
// kernel: digits_convnet.1
$region0: #{digits_convnet.1}
  #allocation0 [shape = 'u32[]', space=smem, size = 0x4, offset = 0x4, fixed_abs, tag = 'smem constant byte address 0x4 - core index']
  #allocation1 [shape = 'u32[72,128]{1,0:T(1,128)}', space=vmem, size = 0x9000, scoped, tag = 'internal scratch']
  %s0 = inlined_call_operand.vmem [shape: f32[2048,64], index: 0, kind: input, shape index: {}]
  %s1 = inlined_call_operand.vmem [shape: f32[288,64], index: 1, kind: input, shape index: {}]
  %s2 = inlined_call_operand.vmem [shape: f32[72,1], index: 2, kind: input, shape index: {}]
  %s3 = inlined_call_operand.vmem [shape: f32[4,72], index: 3, kind: input, shape index: {}]
  %s4 = inlined_call_operand.vmem [shape: f32[4,1], index: 4, kind: input, shape index: {}]
  %s5 = inlined_call_operand.vmem [shape: f32[10,4], index: 5, kind: input, shape index: {}]
  %s6 = inlined_call_operand.vmem [shape: f32[10,1], index: 6, kind: input, shape index: {}]
  %s7 = inlined_call_operand.hbm [shape: f32[10,2048], index: 7, kind: output, shape index: {}]
  %s8 = sld [smem:[#allocation0]]
  $region61: #{digits_convnet.1} parent=0
    _
  %s10 = ssub.s32 1, %s8
  %s11 = scalar_select 0, %s10, %s8
  $region1: #{digits_convnet.1} parent=0
    #allocation2 [shape = 'u8[32768]{0}', space=vmem, size = 0x8000, scoped, tag = 'output window, operand 0']
    #allocation3 [shape = 's32[2]{0}', space=sflag, size = 0x8, scoped, tag = 'scoped memory for digits_convnet.1']
    %12 = vsyncpa [#allocation3], 0
    %s13 = scalar_lea.sflag [#allocation3], 1
    %14 = vsyncpa %s13, 0
    loop: start=0, step=1, limit=10
    $region2: #{digits_convnet.1} parent=1 // loop_pre_header
      _
    $region3: #{digits_convnet.1} parent=1 // loop_header
      %s16 = sphi 0, %s20
      %p17 = scmp.ge.s32.totalorder %s16, 10
      %s26 = sphi 0, %s28
      %s29 = sphi 0, %s26
      %s30 = sphi 0, %s29
      %s46 = sphi 0, %s30
      %s50 = sphi 0, %s50
      %s52 = sphi 0, %s50
      %s53 = sphi 0, %s52
      %s67 = sphi 0, %s53
      %s71 = sphi 0, %s71
      %s73 = sphi 0, %s71
      %s74 = sphi 0, %s73
      %s88 = sphi 0, %s74
      %s92 = sphi 0, %s92
      %s94 = sphi 0, %s92
      %s95 = sphi 0, %s94
      %s109 = sphi 0, %s95
      %s113 = sphi 0, %s113
      %s115 = sphi 0, %s113
      %s116 = sphi 0, %s115
      %s130 = sphi 0, %s116
      %s134 = sphi 0, %s134
      %s136 = sphi 0, %s134
      %s137 = sphi 0, %s136
      %s151 = sphi 0, %s137
      %s155 = sphi 0, %s155
      %s157 = sphi 0, %s155
      %s158 = sphi 0, %s157
      %s172 = sphi 0, %s158
      %s178 = sphi 0, %s180
      %s181 = sphi 0, %s178
      %s182 = sphi 0, %s181
      %s198 = sphi 0, %s182
    $region4: #{digits_convnet.1} parent=1 // loop_header_branch
      %19 = sbr.rel (%p17) target = $region8
    $region5: #{digits_convnet.1} parent=1 // loop_body
      %s21 = ssub.s32 %s16, 1
      %s22 = ssub.s32 %s16, 2
      %s23 = sadd.s32 %s16, 1
      %s24 = ssub.s32 %s16, %s23
      %p25 = scmp.eq.s32.totalorder %s24, 0
      %s27 = sadd.s32 %s26, 1
      %s28 = scalar_select %p25, %s26, %s27
      %p31 = pneg %p25
      %p32 = scmp.eq.s32.totalorder %s16, 7
      %p33 = por %p31, %p32
      %p34 = scmp.ne.s32.totalorder %s26, %s29
      %p35 = scmp.eq.s32.totalorder %s16, 0
      %p36 = por %p34, %p35
      %p37 = scmp.ne.s32.totalorder %s26, %s29
      %p38 = scmp.eq.s32.totalorder %s21, 7
      %p39 = por %p37, %p38
      %p40 = scmp.ne.s32.totalorder %s29, %s30
      %p41 = scmp.eq.s32.totalorder %s21, 0
      %p42 = por %p40, %p41
      %p43 = scmp.ne.s32.totalorder %s29, %s30
      %p44 = scmp.eq.s32.totalorder %s22, 7
      %p45 = por %p43, %p44
      %p47 = scmp.ne.s32.totalorder %s30, %s46
      %p48 = scmp.eq.s32.totalorder %s22, 0
      %p49 = por %p47, %p48
      %s51 = sadd.s32 %s50, 1
      %p54 = scmp.eq.s32.totalorder %s16, 7
      %p55 = scmp.ne.s32.totalorder %s50, %s52
      %p56 = scmp.eq.s32.totalorder %s16, 0
      %p57 = por %p55, %p56
      %p58 = scmp.ne.s32.totalorder %s50, %s52
      %p59 = scmp.eq.s32.totalorder %s21, 7
      %p60 = por %p58, %p59
      %p61 = scmp.ne.s32.totalorder %s52, %s53
      %p62 = scmp.eq.s32.totalorder %s21, 0
      %p63 = por %p61, %p62
      %p64 = scmp.ne.s32.totalorder %s52, %s53
      %p65 = scmp.eq.s32.totalorder %s22, 7
      %p66 = por %p64, %p65
      %p68 = scmp.ne.s32.totalorder %s53, %s67
      %p69 = scmp.eq.s32.totalorder %s22, 0
      %p70 = por %p68, %p69
      %s72 = sadd.s32 %s71, 1
      %p75 = scmp.eq.s32.totalorder %s16, 7
      %p76 = scmp.ne.s32.totalorder %s71, %s73
      %p77 = scmp.eq.s32.totalorder %s16, 0
      %p78 = por %p76, %p77
      %p79 = scmp.ne.s32.totalorder %s71, %s73
      %p80 = scmp.eq.s32.totalorder %s21, 7
      %p81 = por %p79, %p80
      %p82 = scmp.ne.s32.totalorder %s73, %s74
      %p83 = scmp.eq.s32.totalorder %s21, 0
      %p84 = por %p82, %p83
      %p85 = scmp.ne.s32.totalorder %s73, %s74
      %p86 = scmp.eq.s32.totalorder %s22, 7
      %p87 = por %p85, %p86
      %p89 = scmp.ne.s32.totalorder %s74, %s88
      %p90 = scmp.eq.s32.totalorder %s22, 0
      %p91 = por %p89, %p90
      %s93 = sadd.s32 %s92, 1
      %p96 = scmp.eq.s32.totalorder %s16, 7
      %p97 = scmp.ne.s32.totalorder %s92, %s94
      %p98 = scmp.eq.s32.totalorder %s16, 0
      %p99 = por %p97, %p98
      %p100 = scmp.ne.s32.totalorder %s92, %s94
      %p101 = scmp.eq.s32.totalorder %s21, 7
      %p102 = por %p100, %p101
      %p103 = scmp.ne.s32.totalorder %s94, %s95
      %p104 = scmp.eq.s32.totalorder %s21, 0
      %p105 = por %p103, %p104
      %p106 = scmp.ne.s32.totalorder %s94, %s95
      %p107 = scmp.eq.s32.totalorder %s22, 7
      %p108 = por %p106, %p107
      %p110 = scmp.ne.s32.totalorder %s95, %s109
      %p111 = scmp.eq.s32.totalorder %s22, 0
      %p112 = por %p110, %p111
      %s114 = sadd.s32 %s113, 1
      %p117 = scmp.eq.s32.totalorder %s16, 7
      %p118 = scmp.ne.s32.totalorder %s113, %s115
      %p119 = scmp.eq.s32.totalorder %s16, 0
      %p120 = por %p118, %p119
      %p121 = scmp.ne.s32.totalorder %s113, %s115
      %p122 = scmp.eq.s32.totalorder %s21, 7
      %p123 = por %p121, %p122
      %p124 = scmp.ne.s32.totalorder %s115, %s116
      %p125 = scmp.eq.s32.totalorder %s21, 0
      %p126 = por %p124, %p125
      %p127 = scmp.ne.s32.totalorder %s115, %s116
      %p128 = scmp.eq.s32.totalorder %s22, 7
      %p129 = por %p127, %p128
      %p131 = scmp.ne.s32.totalorder %s116, %s130
      %p132 = scmp.eq.s32.totalorder %s22, 0
      %p133 = por %p131, %p132
      %s135 = sadd.s32 %s134, 1
      %p138 = scmp.eq.s32.totalorder %s16, 7
      %p139 = scmp.ne.s32.totalorder %s134, %s136
      %p140 = scmp.eq.s32.totalorder %s16, 0
      %p141 = por %p139, %p140
      %p142 = scmp.ne.s32.totalorder %s134, %s136
      %p143 = scmp.eq.s32.totalorder %s21, 7
      %p144 = por %p142, %p143
      %p145 = scmp.ne.s32.totalorder %s136, %s137
      %p146 = scmp.eq.s32.totalorder %s21, 0
      %p147 = por %p145, %p146
      %p148 = scmp.ne.s32.totalorder %s136, %s137
      %p149 = scmp.eq.s32.totalorder %s22, 7
      %p150 = por %p148, %p149
      %p152 = scmp.ne.s32.totalorder %s137, %s151
      %p153 = scmp.eq.s32.totalorder %s22, 0
      %p154 = por %p152, %p153
      %s156 = sadd.s32 %s155, 1
      %p159 = scmp.eq.s32.totalorder %s16, 7
      %p160 = scmp.ne.s32.totalorder %s155, %s157
      %p161 = scmp.eq.s32.totalorder %s16, 0
      %p162 = por %p160, %p161
      %p163 = scmp.ne.s32.totalorder %s155, %s157
      %p164 = scmp.eq.s32.totalorder %s21, 7
      %p165 = por %p163, %p164
      %p166 = scmp.ne.s32.totalorder %s157, %s158
      %p167 = scmp.eq.s32.totalorder %s21, 0
      %p168 = por %p166, %p167
      %p169 = scmp.ne.s32.totalorder %s157, %s158
      %p170 = scmp.eq.s32.totalorder %s22, 7
      %p171 = por %p169, %p170
      %p173 = scmp.ne.s32.totalorder %s158, %s172
      %p174 = scmp.eq.s32.totalorder %s22, 0
      %p175 = por %p173, %p174
      %s176 = ssub.s32 %s16, %s23
      %p177 = scmp.eq.s32.totalorder %s176, 0
      %s179 = sadd.s32 %s178, 1
      %s180 = scalar_select %p177, %s178, %s179
      %p183 = pneg %p177
      %p184 = scmp.eq.s32.totalorder %s16, 7
      %p185 = por %p183, %p184
      %p186 = scmp.ne.s32.totalorder %s178, %s181
      %p187 = scmp.eq.s32.totalorder %s16, 0
      %p188 = por %p186, %p187
      %p189 = scmp.ne.s32.totalorder %s178, %s181
      %p190 = scmp.eq.s32.totalorder %s21, 7
      %p191 = por %p189, %p190
      %p192 = scmp.ne.s32.totalorder %s181, %s182
      %p193 = scmp.eq.s32.totalorder %s21, 0
      %p194 = por %p192, %p193
      %p195 = scmp.ne.s32.totalorder %s181, %s182
      %p196 = scmp.eq.s32.totalorder %s22, 7
      %p197 = por %p195, %p196
      %p199 = scmp.ne.s32.totalorder %s182, %s198
      %p200 = scmp.eq.s32.totalorder %s22, 0
      %p201 = por %p199, %p200
      %p202 = scmp.le.s32.totalorder 1, %s16
      %p203 = scmp.lt.s32.totalorder %s16, 9
      %p204 = pnand %p202, %p203
      %p205 = pneg %p204
      // Predicated region
      $region9: #{digits_convnet.1} parent=5 // pred_check
        _
      $region10: #{digits_convnet.1} parent=5 // pred_check_branch
        %207 = sbr.rel (%p204) target = $region12
      $region11: #{digits_convnet.1} parent=5 // pred_region
        %s208 = ssub.s32 %s16, 1
        // Predicated region
        $region13: #{digits_convnet.1} parent=11 // pred_check
          %p209 = pneg %p63
        $region14: #{digits_convnet.1} parent=11 // pred_check_branch
          %211 = sbr.rel (%p209) target = $region16
        $region15: #{digits_convnet.1} parent=11 // pred_region
          _
        $region16: #{digits_convnet.1} parent=11 // pred_fallthru
          _
        // Predicated region
        $region17: #{digits_convnet.1} parent=11 // pred_check
          %p212 = pneg %p84
        $region18: #{digits_convnet.1} parent=11 // pred_check_branch
          %214 = sbr.rel (%p212) target = $region20
        $region19: #{digits_convnet.1} parent=11 // pred_region
          _
        $region20: #{digits_convnet.1} parent=11 // pred_fallthru
          _
        // Predicated region
        $region21: #{digits_convnet.1} parent=11 // pred_check
          %p215 = pneg %p105
        $region22: #{digits_convnet.1} parent=11 // pred_check_branch
          %217 = sbr.rel (%p215) target = $region24
        $region23: #{digits_convnet.1} parent=11 // pred_region
          _
        $region24: #{digits_convnet.1} parent=11 // pred_fallthru
          _
        // Predicated region
        $region25: #{digits_convnet.1} parent=11 // pred_check
          %p218 = pneg %p126
        $region26: #{digits_convnet.1} parent=11 // pred_check_branch
          %220 = sbr.rel (%p218) target = $region28
        $region27: #{digits_convnet.1} parent=11 // pred_region
          _
        $region28: #{digits_convnet.1} parent=11 // pred_fallthru
          _
        // Predicated region
        $region29: #{digits_convnet.1} parent=11 // pred_check
          %p221 = pneg %p147
        $region30: #{digits_convnet.1} parent=11 // pred_check_branch
          %223 = sbr.rel (%p221) target = $region32
        $region31: #{digits_convnet.1} parent=11 // pred_region
          _
        $region32: #{digits_convnet.1} parent=11 // pred_fallthru
          _
        // Predicated region
        $region33: #{digits_convnet.1} parent=11 // pred_check
          %p224 = pneg %p168
        $region34: #{digits_convnet.1} parent=11 // pred_check_branch
          %226 = sbr.rel (%p224) target = $region36
        $region35: #{digits_convnet.1} parent=11 // pred_region
          _
        $region36: #{digits_convnet.1} parent=11 // pred_fallthru
          _
      $region12: #{digits_convnet.1} parent=5 // pred_fallthru
        _
      %p227 = scmp.lt.s32.totalorder %s16, 8
      // Predicated region
      $region37: #{digits_convnet.1} parent=5 // pred_check
        %p228 = pneg %p227
      $region38: #{digits_convnet.1} parent=5 // pred_check_branch
        %230 = sbr.rel (%p228) target = $region40
      $region39: #{digits_convnet.1} parent=5 // pred_region
        // Predicated region
        $region41: #{digits_convnet.1} parent=39 // pred_check
          %p231 = pneg %p36
        $region42: #{digits_convnet.1} parent=39 // pred_check_branch
          %233 = sbr.rel (%p231) target = $region44
        $region43: #{digits_convnet.1} parent=39 // pred_region
          %s234 = smul.u32 32, %s16
          %p235 = scmp.lt.s32.totalorder %s234, 255
          %s236 = scalar_select %p235, %s234, 255
          %s237 = smul.addr %s236, 8
          %s238 = scalar_lea.vmem %s0, %s237
          %s239 = smul.u32 32, %s16
        $region44: #{digits_convnet.1} parent=39 // pred_fallthru
          _
      $region40: #{digits_convnet.1} parent=5 // pred_fallthru
        _
      %p240 = scmp.le.s32.totalorder 1, %s16
      %p241 = scmp.lt.s32.totalorder %s16, 9
      %p242 = pnand %p240, %p241
      %p243 = pneg %p242
      // Predicated region
      $region45: #{digits_convnet.1} parent=5 // pred_check
        _
      $region46: #{digits_convnet.1} parent=5 // pred_check_branch
        %245 = sbr.rel (%p242) target = $region48
      $region47: #{digits_convnet.1} parent=5 // pred_region
        %s246 = ssub.s32 %s16, 1
        %s247 = smul.u32 32, %s21
        %p248 = scmp.lt.s32.totalorder %s247, 255
        %s249 = scalar_select %p248, %s247, 255
        %s250 = smul.addr %s249, 8
        %s251 = scalar_lea.vmem %s0, %s250
        %p252 = pneg %p42
        %p253 = pneg %p39
        %p254 = pneg %p63
        %p255 = pneg %p60
        %p256 = pneg %p84
        %p257 = pneg %p81
        %p258 = pneg %p105
        %p259 = pneg %p102
        %p260 = pneg %p126
        %p261 = pneg %p123
        %p262 = pneg %p147
        %p263 = pneg %p144
        %p264 = pneg %p168
        %p265 = pneg %p165
        %p266 = pneg %p194
        %p267 = pneg %p191
        %s268 = sand.u32 %s181, 1
        %s269 = scalar_lea.sflag [#allocation3], %s268
        %s270 = sand.u32 %s181, 1
        %s271 = smul.addr %s270, 32
        %s272 = scalar_lea.vmem [#allocation2], %s271
        %s273 = smul.u32 32, %s21
        %p274 = scmp.lt.s32.totalorder %s273, 255
        %s275 = scalar_select %p274, %s273, 255
        %s276 = smul.addr %s275, 8
        %s277 = scalar_lea.vmem %s0, %s276
        %s278 = smul.u32 32, %s21
        %s279 = smul.u32 2, %s21
        %v280 = vld [vmem:[%s277] sm:$0xff]
        %v281 = vld [vmem:[%s277 + $0x8] sm:$0xff]
        %v282 = vld [vmem:[%s277 + $0x10] sm:$0xff]
        %v283 = vld [vmem:[%s277 + $0x18] sm:$0xff]
        %v284 = vld [vmem:[%s277 + $0x20] sm:$0xff]
        %v285 = vld [vmem:[%s277 + $0x28] sm:$0xff]
        %v286 = vld [vmem:[%s277 + $0x30] sm:$0xff]
        %v287 = vld [vmem:[%s277 + $0x38] sm:$0xff]
        %v288 = vld [vmem:[%s277 + $0x40] sm:$0xff]
        %v289 = vld [vmem:[%s277 + $0x48] sm:$0xff]
        %v290 = vld [vmem:[%s277 + $0x50] sm:$0xff]
        %v291 = vld [vmem:[%s277 + $0x58] sm:$0xff]
        %v292 = vld [vmem:[%s277 + $0x60] sm:$0xff]
        %v293 = vld [vmem:[%s277 + $0x68] sm:$0xff]
        %v294 = vld [vmem:[%s277 + $0x70] sm:$0xff]
        %v295 = vld [vmem:[%s277 + $0x78] sm:$0xff]
        %v296 = vld [vmem:[%s277 + $0x80] sm:$0xff]
        %v297 = vld [vmem:[%s277 + $0x88] sm:$0xff]
        %v298 = vld [vmem:[%s277 + $0x90] sm:$0xff]
        %v299 = vld [vmem:[%s277 + $0x98] sm:$0xff]
        %v300 = vld [vmem:[%s277 + $0xa0] sm:$0xff]
        %v301 = vld [vmem:[%s277 + $0xa8] sm:$0xff]
        %v302 = vld [vmem:[%s277 + $0xb0] sm:$0xff]
        %v303 = vld [vmem:[%s277 + $0xb8] sm:$0xff]
        %v304 = vld [vmem:[%s277 + $0xc0] sm:$0xff]
        %v305 = vld [vmem:[%s277 + $0xc8] sm:$0xff]
        %v306 = vld [vmem:[%s277 + $0xd0] sm:$0xff]
        %v307 = vld [vmem:[%s277 + $0xd8] sm:$0xff]
        %v308 = vld [vmem:[%s277 + $0xe0] sm:$0xff]
        %v309 = vld [vmem:[%s277 + $0xe8] sm:$0xff]
        %v310 = vld [vmem:[%s277 + $0xf0] sm:$0xff]
        %v311 = vld [vmem:[%s277 + $0xf8] sm:$0xff]
        %v312 = vld [vmem:[%s1] sm:$0xff]
        %v313 = vld [vmem:[%s1 + $0x8] sm:$0xff]
        %v314 = vld [vmem:[%s1 + $0x10] sm:$0xff]
        %v315 = vld [vmem:[%s1 + $0x18] sm:$0xff]
        %v316 = vld [vmem:[%s1 + $0x20] sm:$0xff]
        %v317 = vld [vmem:[%s1 + $0x28] sm:$0xff]
        %v318 = vld [vmem:[%s1 + $0x30] sm:$0xff]
        %v319 = vld [vmem:[%s1 + $0x38] sm:$0xff]
        %v320 = vld [vmem:[%s1 + $0x40] sm:$0xff]
        %v321 = vld [vmem:[%s1 + $0x48] sm:$0xff]
        %v322 = vld [vmem:[%s1 + $0x50] sm:$0xff]
        %v323 = vld [vmem:[%s1 + $0x58] sm:$0xff]
        %v324 = vld [vmem:[%s1 + $0x60] sm:$0xff]
        %v325 = vld [vmem:[%s1 + $0x68] sm:$0xff]
        %v326 = vld [vmem:[%s1 + $0x70] sm:$0xff]
        %v327 = vld [vmem:[%s1 + $0x78] sm:$0xff]
        %v328 = vld [vmem:[%s1 + $0x80] sm:$0xff]
        %v329 = vld [vmem:[%s1 + $0x88] sm:$0xff]
        %v330 = vld [vmem:[%s1 + $0x90] sm:$0xff]
        %v331 = vld [vmem:[%s1 + $0x98] sm:$0xff]
        %v332 = vld [vmem:[%s1 + $0xa0] sm:$0xff]
        %v333 = vld [vmem:[%s1 + $0xa8] sm:$0xff]
        %v334 = vld [vmem:[%s1 + $0xb0] sm:$0xff]
        %v335 = vld [vmem:[%s1 + $0xb8] sm:$0xff]
        %v336 = vld [vmem:[%s1 + $0xc0] sm:$0xff]
        %v337 = vld [vmem:[%s1 + $0xc8] sm:$0xff]
        %v338 = vld [vmem:[%s1 + $0xd0] sm:$0xff]
        %v339 = vld [vmem:[%s1 + $0xd8] sm:$0xff]
        %v340 = vld [vmem:[%s1 + $0xe0] sm:$0xff]
        %v341 = vld [vmem:[%s1 + $0xe8] sm:$0xff]
        %v342 = vld [vmem:[%s1 + $0xf0] sm:$0xff]
        %v343 = vld [vmem:[%s1 + $0xf8] sm:$0xff]
        %v344 = vld [vmem:[%s1 + $0x100] sm:$0xff]
        %v345 = vld [vmem:[%s1 + $0x108] sm:$0xff]
        %v346 = vld [vmem:[%s1 + $0x110] sm:$0xff]
        %v347 = vld [vmem:[%s1 + $0x118] sm:$0xff]
        %vm348 = vcmask 523264
        %v350 = vsel %vm348, %v312, 0
        %v353 = vsel %vm348, %v313, 0
        %v356 = vsel %vm348, %v314, 0
        %v359 = vsel %vm348, %v315, 0
        %v362 = vsel %vm348, %v316, 0
        %v365 = vsel %vm348, %v317, 0
        %v368 = vsel %vm348, %v318, 0
        %v371 = vsel %vm348, %v319, 0
        %v374 = vsel %vm348, %v320, 0
        %v377 = vsel %vm348, %v321, 0
        %v380 = vsel %vm348, %v322, 0
        %v383 = vsel %vm348, %v323, 0
        %v386 = vsel %vm348, %v324, 0
        %v389 = vsel %vm348, %v325, 0
        %v392 = vsel %vm348, %v326, 0
        %v395 = vsel %vm348, %v327, 0
        %v398 = vsel %vm348, %v328, 0
        %v401 = vsel %vm348, %v329, 0
        %v404 = vsel %vm348, %v330, 0
        %v407 = vsel %vm348, %v331, 0
        %v410 = vsel %vm348, %v332, 0
        %v413 = vsel %vm348, %v333, 0
        %v416 = vsel %vm348, %v334, 0
        %v419 = vsel %vm348, %v335, 0
        %v422 = vsel %vm348, %v336, 0
        %v425 = vsel %vm348, %v337, 0
        %v428 = vsel %vm348, %v338, 0
        %v431 = vsel %vm348, %v339, 0
        %v434 = vsel %vm348, %v340, 0
        %v437 = vsel %vm348, %v341, 0
        %v440 = vsel %vm348, %v342, 0
        %v443 = vsel %vm348, %v343, 0
        %v446 = vsel %vm348, %v344, 0
        %v449 = vsel %vm348, %v345, 0
        %v452 = vsel %vm348, %v346, 0
        %v455 = vsel %vm348, %v347, 0
        %v458 = vsel %vm348, %v280, 0
        %v461 = vsel %vm348, %v281, 0
        %v464 = vsel %vm348, %v282, 0
        %v467 = vsel %vm348, %v283, 0
        %v470 = vsel %vm348, %v284, 0
        %v473 = vsel %vm348, %v285, 0
        %v476 = vsel %vm348, %v286, 0
        %v479 = vsel %vm348, %v287, 0
        %v482 = vsel %vm348, %v288, 0
        %v485 = vsel %vm348, %v289, 0
        %v488 = vsel %vm348, %v290, 0
        %v491 = vsel %vm348, %v291, 0
        %v494 = vsel %vm348, %v292, 0
        %v497 = vsel %vm348, %v293, 0
        %v500 = vsel %vm348, %v294, 0
        %v503 = vsel %vm348, %v295, 0
        %v506 = vsel %vm348, %v296, 0
        %v509 = vsel %vm348, %v297, 0
        %v512 = vsel %vm348, %v298, 0
        %v515 = vsel %vm348, %v299, 0
        %v518 = vsel %vm348, %v300, 0
        %v521 = vsel %vm348, %v301, 0
        %v524 = vsel %vm348, %v302, 0
        %v527 = vsel %vm348, %v303, 0
        %v530 = vsel %vm348, %v304, 0
        %v533 = vsel %vm348, %v305, 0
        %v536 = vsel %vm348, %v306, 0
        %v539 = vsel %vm348, %v307, 0
        %v542 = vsel %vm348, %v308, 0
        %v545 = vsel %vm348, %v309, 0
        %v548 = vsel %vm348, %v310, 0
        %v551 = vsel %vm348, %v311, 0
        %553 = vmatpush.xpose.msra.mxu0 %v503
        %554 = vmatpush.xpose.msra.mxu0 %v500
        %555 = vmatpush.xpose.msra.mxu0 %v497
        %556 = vmatpush.xpose.msra.mxu0 %v494
        %557 = vmatpush.xpose.msra.mxu0 %v491
        %558 = vmatpush.xpose.msra.mxu0 %v488
        %559 = vmatpush.xpose.msra.mxu0 %v485
        %560 = vmatpush.xpose.msra.mxu0 %v482
        %561 = vmatpush.xpose.msra.mxu0 %v479
        %562 = vmatpush.xpose.msra.mxu0 %v476
        %563 = vmatpush.xpose.msra.mxu0 %v473
        %564 = vmatpush.xpose.msra.mxu0 %v470
        %565 = vmatpush.xpose.msra.mxu0 %v467
        %566 = vmatpush.xpose.msra.mxu0 %v464
        %567 = vmatpush.xpose.msra.mxu0 %v461
        %568 = vmatpush.xpose.msra.mxu0 %v458
        %569 = vmatmul.f32.gmra.mxu0 %v350
        %v570 = vpop.f32.mrf.mxu0
        %v571 = vadd.f32 0.0, %v570
        %572 = vmatmul.f32.gmra.mxu0 %v353
        %v573 = vpop.f32.mrf.mxu0
        %v574 = vadd.f32 0.0, %v573
        %575 = vmatmul.f32.gmra.mxu0 %v356
        %v576 = vpop.f32.mrf.mxu0
        %v577 = vadd.f32 0.0, %v576
        %578 = vmatmul.f32.gmra.mxu0 %v359
        %v579 = vpop.f32.mrf.mxu0
        %v580 = vadd.f32 0.0, %v579
        %581 = vmatmul.f32.gmra.mxu0 %v362
        %v582 = vpop.f32.mrf.mxu0
        %v583 = vadd.f32 0.0, %v582
        %584 = vmatmul.f32.gmra.mxu0 %v365
        %v585 = vpop.f32.mrf.mxu0
        %v586 = vadd.f32 0.0, %v585
        %587 = vmatmul.f32.gmra.mxu0 %v368
        %v588 = vpop.f32.mrf.mxu0
        %v589 = vadd.f32 0.0, %v588
        %590 = vmatmul.f32.gmra.mxu0 %v371
        %v591 = vpop.f32.mrf.mxu0
        %v592 = vadd.f32 0.0, %v591
        %593 = vmatmul.f32.gmra.mxu0 %v374
        %v594 = vpop.f32.mrf.mxu0
        %v595 = vadd.f32 0.0, %v594
        %596 = vmatmul.f32.gmra.mxu0 %v377
        %v597 = vpop.f32.mrf.mxu0
        %v598 = vadd.f32 0.0, %v597
        %599 = vmatmul.f32.gmra.mxu0 %v380
        %v600 = vpop.f32.mrf.mxu0
        %v601 = vadd.f32 0.0, %v600
        %602 = vmatmul.f32.gmra.mxu0 %v383
        %v603 = vpop.f32.mrf.mxu0
        %v604 = vadd.f32 0.0, %v603
        %605 = vmatmul.f32.gmra.mxu0 %v386
        %v606 = vpop.f32.mrf.mxu0
        %v607 = vadd.f32 0.0, %v606
        %608 = vmatmul.f32.gmra.mxu0 %v389
        %v609 = vpop.f32.mrf.mxu0
        %v610 = vadd.f32 0.0, %v609
        %611 = vmatmul.f32.gmra.mxu0 %v392
        %v612 = vpop.f32.mrf.mxu0
        %v613 = vadd.f32 0.0, %v612
        %614 = vmatmul.f32.gmra.mxu0 %v395
        %v615 = vpop.f32.mrf.mxu0
        %v616 = vadd.f32 0.0, %v615
        %617 = vmatmul.f32.gmra.mxu0 %v398
        %v618 = vpop.f32.mrf.mxu0
        %v619 = vadd.f32 0.0, %v618
        %620 = vmatmul.f32.gmra.mxu0 %v401
        %v621 = vpop.f32.mrf.mxu0
        %v622 = vadd.f32 0.0, %v621
        %623 = vmatmul.f32.gmra.mxu0 %v404
        %v624 = vpop.f32.mrf.mxu0
        %v625 = vadd.f32 0.0, %v624
        %626 = vmatmul.f32.gmra.mxu0 %v407
        %v627 = vpop.f32.mrf.mxu0
        %v628 = vadd.f32 0.0, %v627
        %629 = vmatmul.f32.gmra.mxu0 %v410
        %v630 = vpop.f32.mrf.mxu0
        %v631 = vadd.f32 0.0, %v630
        %632 = vmatmul.f32.gmra.mxu0 %v413
        %v633 = vpop.f32.mrf.mxu0
        %v634 = vadd.f32 0.0, %v633
        %635 = vmatmul.f32.gmra.mxu0 %v416
        %v636 = vpop.f32.mrf.mxu0
        %v637 = vadd.f32 0.0, %v636
        %638 = vmatmul.f32.gmra.mxu0 %v419
        %v639 = vpop.f32.mrf.mxu0
        %v640 = vadd.f32 0.0, %v639
        %641 = vmatmul.f32.gmra.mxu0 %v422
        %v642 = vpop.f32.mrf.mxu0
        %v643 = vadd.f32 0.0, %v642
        %644 = vmatmul.f32.gmra.mxu0 %v425
        %v645 = vpop.f32.mrf.mxu0
        %v646 = vadd.f32 0.0, %v645
        %647 = vmatmul.f32.gmra.mxu0 %v428
        %v648 = vpop.f32.mrf.mxu0
        %v649 = vadd.f32 0.0, %v648
        %650 = vmatmul.f32.gmra.mxu0 %v431
        %v651 = vpop.f32.mrf.mxu0
        %v652 = vadd.f32 0.0, %v651
        %653 = vmatmul.f32.gmra.mxu0 %v434
        %v654 = vpop.f32.mrf.mxu0
        %v655 = vadd.f32 0.0, %v654
        %656 = vmatmul.f32.gmra.mxu0 %v437
        %v657 = vpop.f32.mrf.mxu0
        %v658 = vadd.f32 0.0, %v657
        %659 = vmatmul.f32.gmra.mxu0 %v440
        %v660 = vpop.f32.mrf.mxu0
        %v661 = vadd.f32 0.0, %v660
        %662 = vmatmul.f32.gmra.mxu0 %v443
        %v663 = vpop.f32.mrf.mxu0
        %v664 = vadd.f32 0.0, %v663
        %665 = vmatmul.f32.gmra.mxu0 %v446
        %v666 = vpop.f32.mrf.mxu0
        %v667 = vadd.f32 0.0, %v666
        %668 = vmatmul.f32.gmra.mxu0 %v449
        %v669 = vpop.f32.mrf.mxu0
        %v670 = vadd.f32 0.0, %v669
        %671 = vmatmul.f32.gmra.mxu0 %v452
        %v672 = vpop.f32.mrf.mxu0
        %v673 = vadd.f32 0.0, %v672
        %674 = vmatmul.f32.gmra.mxu0 %v455
        %v675 = vpop.f32.mrf.mxu0
        %v676 = vadd.f32 0.0, %v675
        %677 = vdwg.mxu0
        %678 = vmatpush.xpose.msra.mxu0 %v551
        %679 = vmatpush.xpose.msra.mxu0 %v548
        %680 = vmatpush.xpose.msra.mxu0 %v545
        %681 = vmatpush.xpose.msra.mxu0 %v542
        %682 = vmatpush.xpose.msra.mxu0 %v539
        %683 = vmatpush.xpose.msra.mxu0 %v536
        %684 = vmatpush.xpose.msra.mxu0 %v533
        %685 = vmatpush.xpose.msra.mxu0 %v530
        %686 = vmatpush.xpose.msra.mxu0 %v527
        %687 = vmatpush.xpose.msra.mxu0 %v524
        %688 = vmatpush.xpose.msra.mxu0 %v521
        %689 = vmatpush.xpose.msra.mxu0 %v518
        %690 = vmatpush.xpose.msra.mxu0 %v515
        %691 = vmatpush.xpose.msra.mxu0 %v512
        %692 = vmatpush.xpose.msra.mxu0 %v509
        %693 = vmatpush.xpose.msra.mxu0 %v506
        %694 = vmatmul.f32.gmra.mxu0 %v350
        %v695 = vpop.f32.mrf.mxu0
        %v696 = vadd.f32 0.0, %v695
        %697 = vmatmul.f32.gmra.mxu0 %v353
        %v698 = vpop.f32.mrf.mxu0
        %v699 = vadd.f32 0.0, %v698
        %700 = vmatmul.f32.gmra.mxu0 %v356
        %v701 = vpop.f32.mrf.mxu0
        %v702 = vadd.f32 0.0, %v701
        %703 = vmatmul.f32.gmra.mxu0 %v359
        %v704 = vpop.f32.mrf.mxu0
        %v705 = vadd.f32 0.0, %v704
        %706 = vmatmul.f32.gmra.mxu0 %v362
        %v707 = vpop.f32.mrf.mxu0
        %v708 = vadd.f32 0.0, %v707
        %709 = vmatmul.f32.gmra.mxu0 %v365
        %v710 = vpop.f32.mrf.mxu0
        %v711 = vadd.f32 0.0, %v710
        %712 = vmatmul.f32.gmra.mxu0 %v368
        %v713 = vpop.f32.mrf.mxu0
        %v714 = vadd.f32 0.0, %v713
        %715 = vmatmul.f32.gmra.mxu0 %v371
        %v716 = vpop.f32.mrf.mxu0
        %v717 = vadd.f32 0.0, %v716
        %718 = vmatmul.f32.gmra.mxu0 %v374
        %v719 = vpop.f32.mrf.mxu0
        %v720 = vadd.f32 0.0, %v719
        %721 = vmatmul.f32.gmra.mxu0 %v377
        %v722 = vpop.f32.mrf.mxu0
        %v723 = vadd.f32 0.0, %v722
        %724 = vmatmul.f32.gmra.mxu0 %v380
        %v725 = vpop.f32.mrf.mxu0
        %v726 = vadd.f32 0.0, %v725
        %727 = vmatmul.f32.gmra.mxu0 %v383
        %v728 = vpop.f32.mrf.mxu0
        %v729 = vadd.f32 0.0, %v728
        %730 = vmatmul.f32.gmra.mxu0 %v386
        %v731 = vpop.f32.mrf.mxu0
        %v732 = vadd.f32 0.0, %v731
        %733 = vmatmul.f32.gmra.mxu0 %v389
        %v734 = vpop.f32.mrf.mxu0
        %v735 = vadd.f32 0.0, %v734
        %736 = vmatmul.f32.gmra.mxu0 %v392
        %v737 = vpop.f32.mrf.mxu0
        %v738 = vadd.f32 0.0, %v737
        %739 = vmatmul.f32.gmra.mxu0 %v395
        %v740 = vpop.f32.mrf.mxu0
        %v741 = vadd.f32 0.0, %v740
        %742 = vmatmul.f32.gmra.mxu0 %v398
        %v743 = vpop.f32.mrf.mxu0
        %v744 = vadd.f32 0.0, %v743
        %745 = vmatmul.f32.gmra.mxu0 %v401
        %v746 = vpop.f32.mrf.mxu0
        %v747 = vadd.f32 0.0, %v746
        %748 = vmatmul.f32.gmra.mxu0 %v404
        %v749 = vpop.f32.mrf.mxu0
        %v750 = vadd.f32 0.0, %v749
        %751 = vmatmul.f32.gmra.mxu0 %v407
        %v752 = vpop.f32.mrf.mxu0
        %v753 = vadd.f32 0.0, %v752
        %754 = vmatmul.f32.gmra.mxu0 %v410
        %v755 = vpop.f32.mrf.mxu0
        %v756 = vadd.f32 0.0, %v755
        %757 = vmatmul.f32.gmra.mxu0 %v413
        %v758 = vpop.f32.mrf.mxu0
        %v759 = vadd.f32 0.0, %v758
        %760 = vmatmul.f32.gmra.mxu0 %v416
        %v761 = vpop.f32.mrf.mxu0
        %v762 = vadd.f32 0.0, %v761
        %763 = vmatmul.f32.gmra.mxu0 %v419
        %v764 = vpop.f32.mrf.mxu0
        %v765 = vadd.f32 0.0, %v764
        %766 = vmatmul.f32.gmra.mxu0 %v422
        %v767 = vpop.f32.mrf.mxu0
        %v768 = vadd.f32 0.0, %v767
        %769 = vmatmul.f32.gmra.mxu0 %v425
        %v770 = vpop.f32.mrf.mxu0
        %v771 = vadd.f32 0.0, %v770
        %772 = vmatmul.f32.gmra.mxu0 %v428
        %v773 = vpop.f32.mrf.mxu0
        %v774 = vadd.f32 0.0, %v773
        %775 = vmatmul.f32.gmra.mxu0 %v431
        %v776 = vpop.f32.mrf.mxu0
        %v777 = vadd.f32 0.0, %v776
        %778 = vmatmul.f32.gmra.mxu0 %v434
        %v779 = vpop.f32.mrf.mxu0
        %v780 = vadd.f32 0.0, %v779
        %781 = vmatmul.f32.gmra.mxu0 %v437
        %v782 = vpop.f32.mrf.mxu0
        %v783 = vadd.f32 0.0, %v782
        %784 = vmatmul.f32.gmra.mxu0 %v440
        %v785 = vpop.f32.mrf.mxu0
        %v786 = vadd.f32 0.0, %v785
        %787 = vmatmul.f32.gmra.mxu0 %v443
        %v788 = vpop.f32.mrf.mxu0
        %v789 = vadd.f32 0.0, %v788
        %790 = vmatmul.f32.gmra.mxu0 %v446
        %v791 = vpop.f32.mrf.mxu0
        %v792 = vadd.f32 0.0, %v791
        %793 = vmatmul.f32.gmra.mxu0 %v449
        %v794 = vpop.f32.mrf.mxu0
        %v795 = vadd.f32 0.0, %v794
        %796 = vmatmul.f32.gmra.mxu0 %v452
        %v797 = vpop.f32.mrf.mxu0
        %v798 = vadd.f32 0.0, %v797
        %799 = vmatmul.f32.gmra.mxu0 %v455
        %v800 = vpop.f32.mrf.mxu0
        %v801 = vadd.f32 0.0, %v800
        %802 = vdwg.mxu0
        %v803 = vmax.f32 %v571, %v598
        %v804 = vmax.f32 %v696, %v723
        %v805 = vmax.f32 %v574, %v601
        %v806 = vmax.f32 %v699, %v726
        %v807 = vmax.f32 %v577, %v604
        %v808 = vmax.f32 %v702, %v729
        %v809 = vmax.f32 %v580, %v607
        %v810 = vmax.f32 %v705, %v732
        %v811 = vmax.f32 %v583, %v610
        %v812 = vmax.f32 %v708, %v735
        %v813 = vmax.f32 %v586, %v613
        %v814 = vmax.f32 %v711, %v738
        %v815 = vmax.f32 %v589, %v616
        %v816 = vmax.f32 %v714, %v741
        %v817 = vmax.f32 %v592, %v619
        %v818 = vmax.f32 %v717, %v744
        %v819 = vmax.f32 %v595, %v622
        %v820 = vmax.f32 %v720, %v747
        %v821 = vmax.f32 %v625, %v652
        %v822 = vmax.f32 %v750, %v777
        %v823 = vmax.f32 %v628, %v655
        %v824 = vmax.f32 %v753, %v780
        %v825 = vmax.f32 %v631, %v658
        %v826 = vmax.f32 %v756, %v783
        %v827 = vmax.f32 %v634, %v661
        %v828 = vmax.f32 %v759, %v786
        %v829 = vmax.f32 %v637, %v664
        %v830 = vmax.f32 %v762, %v789
        %v831 = vmax.f32 %v640, %v667
        %v832 = vmax.f32 %v765, %v792
        %v833 = vmax.f32 %v643, %v670
        %v834 = vmax.f32 %v768, %v795
        %v835 = vmax.f32 %v646, %v673
        %v836 = vmax.f32 %v771, %v798
        %v837 = vmax.f32 %v649, %v676
        %v838 = vmax.f32 %v774, %v801
        %v839 = vmax.f32 %v803, %v821
        %v840 = vmax.f32 %v804, %v822
        %v841 = vmax.f32 %v805, %v823
        %v842 = vmax.f32 %v806, %v824
        %v843 = vmax.f32 %v807, %v825
        %v844 = vmax.f32 %v808, %v826
        %v845 = vmax.f32 %v809, %v827
        %v846 = vmax.f32 %v810, %v828
        %v847 = vmax.f32 %v811, %v829
        %v848 = vmax.f32 %v812, %v830
        %v849 = vmax.f32 %v813, %v831
        %v850 = vmax.f32 %v814, %v832
        %v851 = vmax.f32 %v815, %v833
        %v852 = vmax.f32 %v816, %v834
        %v853 = vmax.f32 %v817, %v835
        %v854 = vmax.f32 %v818, %v836
        %v855 = vmax.f32 %v819, %v837
        %v856 = vmax.f32 %v820, %v838
        %v857 = vld [vmem:[%s2] sm:$0xff]
        %v858 = vld [vmem:[%s2 + $0x8] sm:$0xff]
        %v859 = vld [vmem:[%s2 + $0x10] sm:$0xff]
        %v860 = vld [vmem:[%s2 + $0x18] sm:$0xff]
        %v861 = vld [vmem:[%s2 + $0x20] sm:$0xff]
        %v862 = vld [vmem:[%s2 + $0x28] sm:$0xff]
        %v863 = vld [vmem:[%s2 + $0x30] sm:$0xff]
        %v864 = vld [vmem:[%s2 + $0x38] sm:$0xff]
        %v865 = vld [vmem:[%s2 + $0x40] sm:$0xff]
        %867 = vset.pattern.permute.xlu0 0
        %868 = vperm.xlu0 %867, %v857
        %v869 = vpop.permute.xlu0 %868
        %872 = vset.pattern.permute.xlu0 0
        %873 = vperm.xlu0 %872, %v858
        %v874 = vpop.permute.xlu0 %873
        %877 = vset.pattern.permute.xlu0 0
        %878 = vperm.xlu0 %877, %v859
        %v879 = vpop.permute.xlu0 %878
        %882 = vset.pattern.permute.xlu0 0
        %883 = vperm.xlu0 %882, %v860
        %v884 = vpop.permute.xlu0 %883
        %887 = vset.pattern.permute.xlu0 0
        %888 = vperm.xlu0 %887, %v861
        %v889 = vpop.permute.xlu0 %888
        %892 = vset.pattern.permute.xlu0 0
        %893 = vperm.xlu0 %892, %v862
        %v894 = vpop.permute.xlu0 %893
        %897 = vset.pattern.permute.xlu0 0
        %898 = vperm.xlu0 %897, %v863
        %v899 = vpop.permute.xlu0 %898
        %902 = vset.pattern.permute.xlu0 0
        %903 = vperm.xlu0 %902, %v864
        %v904 = vpop.permute.xlu0 %903
        %907 = vset.pattern.permute.xlu0 0
        %908 = vperm.xlu0 %907, %v865
        %v909 = vpop.permute.xlu0 %908
        %v911 = vadd.f32 %v839, %v869
        %v912 = vadd.f32 %v840, %v869
        %v913 = vadd.f32 %v841, %v874
        %v914 = vadd.f32 %v842, %v874
        %v915 = vadd.f32 %v843, %v879
        %v916 = vadd.f32 %v844, %v879
        %v917 = vadd.f32 %v845, %v884
        %v918 = vadd.f32 %v846, %v884
        %v919 = vadd.f32 %v847, %v889
        %v920 = vadd.f32 %v848, %v889
        %v921 = vadd.f32 %v849, %v894
        %v922 = vadd.f32 %v850, %v894
        %v923 = vadd.f32 %v851, %v899
        %v924 = vadd.f32 %v852, %v899
        %v925 = vadd.f32 %v853, %v904
        %v926 = vadd.f32 %v854, %v904
        %v927 = vadd.f32 %v855, %v909
        %v928 = vadd.f32 %v856, %v909
        %v929 = vmax.f32 %v911, 0.0
        %v930 = vmax.f32 %v912, 0.0
        %v931 = vmax.f32 %v913, 0.0
        %v932 = vmax.f32 %v914, 0.0
        %v933 = vmax.f32 %v915, 0.0
        %v934 = vmax.f32 %v916, 0.0
        %v935 = vmax.f32 %v917, 0.0
        %v936 = vmax.f32 %v918, 0.0
        %v937 = vmax.f32 %v919, 0.0
        %v938 = vmax.f32 %v920, 0.0
        %v939 = vmax.f32 %v921, 0.0
        %v940 = vmax.f32 %v922, 0.0
        %v941 = vmax.f32 %v923, 0.0
        %v942 = vmax.f32 %v924, 0.0
        %v943 = vmax.f32 %v925, 0.0
        %v944 = vmax.f32 %v926, 0.0
        %v945 = vmax.f32 %v927, 0.0
        %v946 = vmax.f32 %v928, 0.0
        %v947 = vld [vmem:[%s3] sm:$0xf]
        %v948 = vld [vmem:[%s4] sm:$0xf]
        %950 = vset.pattern.permute.xlu0 0
        %951 = vperm.xlu0 %950, %v948
        %v952 = vpop.permute.xlu0 %951
        %vm954 = vcmask 588800
        %v956 = vsel %vm954, %v947, 0
        %958 = vmatpush.msra.mxu0 0.0
        %959 = vmatpush.msra.mxu0 0.0
        %960 = vmatpush.msra.mxu0 0.0
        %961 = vmatpush.msra.mxu0 0.0
        %962 = vmatpush.msra.mxu0 0.0
        %963 = vmatpush.msra.mxu0 0.0
        %964 = vmatpush.msra.mxu0 0.0
        %965 = vmatpush.msra.mxu0 %v945
        %966 = vmatpush.msra.mxu0 %v943
        %967 = vmatpush.msra.mxu0 %v941
        %968 = vmatpush.msra.mxu0 %v939
        %969 = vmatpush.msra.mxu0 %v937
        %970 = vmatpush.msra.mxu0 %v935
        %971 = vmatpush.msra.mxu0 %v933
        %972 = vmatpush.msra.mxu0 %v931
        %973 = vmatpush.msra.mxu0 %v929
        %974 = vmatmul.f32.gmra.mxu0 %v956
        %v975 = vpop.f32.mrf.mxu0
        %v976 = vadd.f32 %v952, %v975
        %977 = vdwg.mxu0
        %978 = vmatpush.msra.mxu0 0.0
        %979 = vmatpush.msra.mxu0 0.0
        %980 = vmatpush.msra.mxu0 0.0
        %981 = vmatpush.msra.mxu0 0.0
        %982 = vmatpush.msra.mxu0 0.0
        %983 = vmatpush.msra.mxu0 0.0
        %984 = vmatpush.msra.mxu0 0.0
        %985 = vmatpush.msra.mxu0 %v946
        %986 = vmatpush.msra.mxu0 %v944
        %987 = vmatpush.msra.mxu0 %v942
        %988 = vmatpush.msra.mxu0 %v940
        %989 = vmatpush.msra.mxu0 %v938
        %990 = vmatpush.msra.mxu0 %v936
        %991 = vmatpush.msra.mxu0 %v934
        %992 = vmatpush.msra.mxu0 %v932
        %993 = vmatpush.msra.mxu0 %v930
        %994 = vmatmul.f32.gmra.mxu0 %v956
        %v995 = vpop.f32.mrf.mxu0
        %v996 = vadd.f32 %v952, %v995
        %997 = vdwg.mxu0
        %v998 = vmax.f32 %v976, 0.0
        %v999 = vmax.f32 %v996, 0.0
        %v1000 = vld [vmem:[%s5] sm:$0xff]
        %v1001 = vld [vmem:[%s5 + $0x8] sm:$0x3]
        %v1002 = vld [vmem:[%s6] sm:$0xff]
        %v1003 = vld [vmem:[%s6 + $0x8] sm:$0x3]
        %1005 = vset.pattern.permute.xlu0 0
        %1006 = vperm.xlu0 %1005, %v1002
        %v1007 = vpop.permute.xlu0 %1006
        %1010 = vset.pattern.permute.xlu0 0
        %1011 = vperm.xlu0 %1010, %v1003
        %v1012 = vpop.permute.xlu0 %1011
        %vm1014 = vcmask 31744
        %v1016 = vsel %vm1014, %v1000, 0
        %v1019 = vsel %vm1014, %v1001, 0
        %vm1021 = vcmask 1043456
        %v1023 = vsel %vm1021, %v998, 0
        %v1026 = vsel %vm1021, %v999, 0
        %1028 = vmatpush.msra.mxu0 0.0
        %1029 = vmatpush.msra.mxu0 0.0
        %1030 = vmatpush.msra.mxu0 0.0
        %1031 = vmatpush.msra.mxu0 0.0
        %1032 = vmatpush.msra.mxu0 0.0
        %1033 = vmatpush.msra.mxu0 0.0
        %1034 = vmatpush.msra.mxu0 0.0
        %1035 = vmatpush.msra.mxu0 0.0
        %1036 = vmatpush.msra.mxu0 0.0
        %1037 = vmatpush.msra.mxu0 0.0
        %1038 = vmatpush.msra.mxu0 0.0
        %1039 = vmatpush.msra.mxu0 0.0
        %1040 = vmatpush.msra.mxu0 0.0
        %1041 = vmatpush.msra.mxu0 0.0
        %1042 = vmatpush.msra.mxu0 0.0
        %1043 = vmatpush.msra.mxu0 %v1023
        %1044 = vmatmul.f32.gmra.mxu0 %v1016
        %v1045 = vpop.f32.mrf.mxu0
        %v1046 = vadd.f32 %v1007, %v1045
        %1047 = vmatmul.f32.gmra.mxu0 %v1019
        %v1048 = vpop.f32.mrf.mxu0
        %v1049 = vadd.f32 %v1012, %v1048
        %1050 = vdwg.mxu0
        %1051 = vmatpush.msra.mxu0 0.0
        %1052 = vmatpush.msra.mxu0 0.0
        %1053 = vmatpush.msra.mxu0 0.0
        %1054 = vmatpush.msra.mxu0 0.0
        %1055 = vmatpush.msra.mxu0 0.0
        %1056 = vmatpush.msra.mxu0 0.0
        %1057 = vmatpush.msra.mxu0 0.0
        %1058 = vmatpush.msra.mxu0 0.0
        %1059 = vmatpush.msra.mxu0 0.0
        %1060 = vmatpush.msra.mxu0 0.0
        %1061 = vmatpush.msra.mxu0 0.0
        %1062 = vmatpush.msra.mxu0 0.0
        %1063 = vmatpush.msra.mxu0 0.0
        %1064 = vmatpush.msra.mxu0 0.0
        %1065 = vmatpush.msra.mxu0 0.0
        %1066 = vmatpush.msra.mxu0 %v1026
        %1067 = vmatmul.f32.gmra.mxu0 %v1016
        %v1068 = vpop.f32.mrf.mxu0
        %v1069 = vadd.f32 %v1007, %v1068
        %1070 = vmatmul.f32.gmra.mxu0 %v1019
        %v1071 = vpop.f32.mrf.mxu0
        %v1072 = vadd.f32 %v1012, %v1071
        %1073 = vdwg.mxu0
        %1074 = vst [vmem:[%s272] sm:$0xff] %v1046
        %1075 = vst [vmem:[%s272 + $0x8] sm:$0xff] %v1069
        %1076 = vst [vmem:[%s272 + $0x10] sm:$0x3] %v1049
        %1077 = vst [vmem:[%s272 + $0x18] sm:$0x3] %v1072
        %s1078 = sand.u32 %s181, 1
        %s1079 = scalar_lea.sflag [#allocation3], %s1078
        %s1080 = sand.u32 %s181, 1
        %s1081 = smul.addr %s1080, 32
        %s1082 = scalar_lea.vmem [#allocation2], %s1081
        // Predicated region
        $region49: #{digits_convnet.1} parent=47 // pred_check
          %p1083 = pneg %p191
        $region50: #{digits_convnet.1} parent=47 // pred_check_branch
          %1085 = sbr.rel (%p1083) target = $region52
        $region51: #{digits_convnet.1} parent=47 // pred_region
          %s1086 = smul.u32 2, %s21
          %1088 = vsyncadd %s1079, 0
          %s1089 = smul.addr %s1086, 8
          %s1090 = scalar_lea.hbm %s7, %s1089
          %s1091 = sshll.u32 %s1082, 4
          %s1092 = int_to_ptr.vmem [resolvable:$true] %s1091
          %s1093 = sshll.u32 %s1090, 4
          %s1094 = int_to_ptr.hbm [resolvable:$true] %s1093
          %1099 = dma.vmem_to_hbm [thread:$0]  %s1092, 512, %s1094, %s1079, 256, 2048, 16
        $region52: #{digits_convnet.1} parent=47 // pred_fallthru
          _
      $region48: #{digits_convnet.1} parent=5 // pred_fallthru
        _
      %p1100 = scmp.le.s32.totalorder 2, %s16
      // Predicated region
      $region53: #{digits_convnet.1} parent=5 // pred_check
        %p1101 = pneg %p1100
      $region54: #{digits_convnet.1} parent=5 // pred_check_branch
        %1103 = sbr.rel (%p1101) target = $region56
      $region55: #{digits_convnet.1} parent=5 // pred_region
        %s1104 = ssub.s32 %s16, 2
        // Predicated region
        $region57: #{digits_convnet.1} parent=55 // pred_check
          %p1105 = pneg %p197
        $region58: #{digits_convnet.1} parent=55 // pred_check_branch
          %1107 = sbr.rel (%p1105) target = $region60
        $region59: #{digits_convnet.1} parent=55 // pred_region
          %s1108 = sand.u32 %s182, 1
          %s1109 = scalar_lea.sflag [#allocation3], %s1108
          %s1110 = sand.u32 %s182, 1
          %s1111 = smul.addr %s1110, 32
          %s1112 = scalar_lea.vmem [#allocation2], %s1111
          %1114 = dma.done %s1109, 512
        $region60: #{digits_convnet.1} parent=55 // pred_fallthru
          _
      $region56: #{digits_convnet.1} parent=5 // pred_fallthru
        _
    $region6: #{digits_convnet.1} parent=1 // loop_footer
      %s20 = sadd.s32 1, %s16
    $region7: #{digits_convnet.1} parent=1 // loop_footer_branch
      %15 = sbr.rel target = $region3
    $region8: #{digits_convnet.1} parent=1 // loop_exit
      _
    %1115 = vsyncpa [#allocation3], 1
    %s1116 = scalar_lea.sflag [#allocation3], 1
    %1117 = vsyncpa %s1116, 1

</llo_original>
